<compile_context>
chip_gen: v7x
topology: tpu7x:2x2x1
jax: 0.10.0
libtpu: 0.0.40
codegen_flags: <defaults>
</compile_context>

<pallas_src>
import math
import functools

import jax
import jax.numpy as jnp
from jax.experimental import pallas as pl
from jax.experimental.pallas import tpu as pltpu


# ----------------------------- helpers ---------------------------------------

def _pick_tile(dim, target, base):
    """Largest tile <= target that divides dim and is a multiple of `base`,
    falling back to the full dimension (full-extent blocks are always legal)."""
    if dim <= target:
        return dim
    t = (target // base) * base
    while t >= base:
        if dim % t == 0:
            return t
        t -= base
    return dim


# ----------------------------- tiled linear ----------------------------------

def _matmul_kernel(x_ref, w_ref, o_ref, acc_ref):
    @pl.when(pl.program_id(2) == 0)
    def _():
        acc_ref[...] = jnp.zeros(acc_ref.shape, jnp.float32)

    acc_ref[...] += jnp.dot(
        x_ref[...], w_ref[...], preferred_element_type=jnp.float32
    )

    @pl.when(pl.program_id(2) == pl.num_programs(2) - 1)
    def _():
        o_ref[...] = acc_ref[...].astype(o_ref.dtype)


def linear(x, w):
    """y = x @ w, tiled & pipelined.  x: (M, K), w: (K, N)."""
    M, K = x.shape
    K2, N = w.shape
    assert K == K2
    tm = _pick_tile(M, 256, 8)
    tn = _pick_tile(N, 256, 128)
    tk = _pick_tile(K, 512, 128)
    grid = (M // tm, N // tn, K // tk)
    itemsize = x.dtype.itemsize
    return pl.pallas_call(
        _matmul_kernel,
        out_shape=jax.ShapeDtypeStruct((M, N), x.dtype),
        grid=grid,
        in_specs=[
            pl.BlockSpec((tm, tk), lambda i, j, k: (i, k)),
            pl.BlockSpec((tk, tn), lambda i, j, k: (k, j)),
        ],
        out_specs=pl.BlockSpec((tm, tn), lambda i, j, k: (i, j)),
        scratch_shapes=[pltpu.VMEM((tm, tn), jnp.float32)],
        compiler_params=pltpu.CompilerParams(
            dimension_semantics=("parallel", "parallel", "arbitrary"),
            vmem_limit_bytes=64 * 1024 * 1024,
        ),
        cost_estimate=pl.CostEstimate(
            flops=2 * M * N * K,
            transcendentals=0,
            bytes_accessed=(M * K + K * N + M * N) * itemsize,
        ),
    )(x, w)


# --------------------------- flash attention ----------------------------------

def _flash_kernel(q_ref, k_ref, v_ref, o_ref, m_sc, l_sc, acc_sc, *, scale, block):
    qi = pl.program_id(2)
    ki = pl.program_id(3)

    @pl.when(ki == 0)
    def _():
        m_sc[...] = jnp.full(m_sc.shape, -jnp.inf, jnp.float32)
        l_sc[...] = jnp.zeros(l_sc.shape, jnp.float32)
        acc_sc[...] = jnp.zeros(acc_sc.shape, jnp.float32)

    # Skip KV blocks that lie entirely above the causal diagonal (TQ == TKV).
    @pl.when(ki <= qi)
    def _():
        q = q_ref[0, 0]          # (T, hd)
        k = k_ref[0, 0]          # (T, hd)
        v = v_ref[0, 0]          # (T, hd)

        # q @ k^T without a materialized transpose (contract on head_dim).
        s = jax.lax.dot_general(
            q, k, (((1,), (1,)), ((), ())),
            preferred_element_type=jnp.float32,
        ) * scale                                            # (T, T) f32

        # In-kernel causal mask (large-finite instead of -inf).
        row = qi * block + jax.lax.broadcasted_iota(jnp.int32, (block, block), 0)
        col = ki * block + jax.lax.broadcasted_iota(jnp.int32, (block, block), 1)
        s = jnp.where(row >= col, s, -1e30)

        m_prev = m_sc[...]                                   # (T, 1)
        m_new = jnp.maximum(m_prev, jnp.max(s, axis=-1, keepdims=True))
        alpha = jnp.exp(m_prev - m_new)
        p = jnp.exp(s - m_new)                               # (T, T)
        l_sc[...] = alpha * l_sc[...] + jnp.sum(p, axis=-1, keepdims=True)
        acc_sc[...] = alpha * acc_sc[...] + jnp.dot(
            p.astype(v.dtype), v, preferred_element_type=jnp.float32
        )
        m_sc[...] = m_new

    @pl.when(ki == pl.num_programs(3) - 1)
    def _():
        inv_l = pl.reciprocal(l_sc[...], approx=True)
        o_ref[0, 0] = (acc_sc[...] * inv_l).astype(o_ref.dtype)


def flash_attention(q, k, v, *, n_rep):
    """q: (B, H, S, hd); k, v: (B, KVH, S, hd) un-replicated (GQA via index_map)."""
    B, H, S, hd = q.shape
    KVH = k.shape[1]
    assert H == KVH * n_rep

    t = _pick_tile(S, 256, 8)       # TQ == TKV
    nq = S // t
    scale = 1.0 / math.sqrt(hd)
    kernel = functools.partial(_flash_kernel, scale=scale, block=t)

    def q_map(b, h, qi, ki):
        return (b, h, qi, 0)

    def kv_map(b, h, qi, ki):
        # GQA: query head h reads kv head h // n_rep.
        # Clamp ki to qi so DMAs for skipped (above-diagonal) blocks are elided.
        return (b, h // n_rep, jnp.minimum(ki, qi), 0)

    itemsize = q.dtype.itemsize
    return pl.pallas_call(
        kernel,
        out_shape=jax.ShapeDtypeStruct((B, H, S, hd), q.dtype),
        grid=(B, H, nq, nq),
        in_specs=[
            pl.BlockSpec((1, 1, t, hd), q_map),
            pl.BlockSpec((1, 1, t, hd), kv_map),
            pl.BlockSpec((1, 1, t, hd), kv_map),
        ],
        out_specs=pl.BlockSpec((1, 1, t, hd), q_map),
        scratch_shapes=[
            pltpu.VMEM((t, 1), jnp.float32),    # running max m
            pltpu.VMEM((t, 1), jnp.float32),    # running denom l
            pltpu.VMEM((t, hd), jnp.float32),   # output accumulator
        ],
        compiler_params=pltpu.CompilerParams(
            dimension_semantics=("parallel", "parallel", "parallel", "arbitrary"),
            vmem_limit_bytes=64 * 1024 * 1024,
        ),
        cost_estimate=pl.CostEstimate(
            flops=2 * B * H * S * S * hd,            # causal ~half of 2*2*B*H*S^2*hd
            transcendentals=B * H * S * S // 2,
            bytes_accessed=(B * H * 2 + B * KVH * 2) * S * hd * itemsize,
        ),
    )(q, k, v)


# ------------------------------ JAX glue -------------------------------------

def apply_rotary_emb(xq, xk, freqs_cos, freqs_sin):
    """Llama-style interleaved RoPE (matches the reference module exactly).
    xq: (B, S, H, hd), xk: (B, S, KVH, hd); freqs_*: (S, hd//2)."""
    def rope(x):
        B, S, H, hd = x.shape
        xr = x.reshape(B, S, H, hd // 2, 2)
        x_r, x_i = xr[..., 0], xr[..., 1]
        cos = freqs_cos[None, :, None, :]
        sin = freqs_sin[None, :, None, :]
        o_r = x_r * cos - x_i * sin
        o_i = x_r * sin + x_i * cos
        out = jnp.stack([o_r, o_i], axis=-1).reshape(B, S, H, hd)
        return out.astype(x.dtype)
    return rope(xq), rope(xk)


class AttentionPallas:
    def __init__(self, dim, n_heads, n_kv_heads, max_seq_len, extend_seq_len,
                 key=jax.random.PRNGKey(42), dtype=jnp.float32):
        assert n_heads % n_kv_heads == 0
        self.dim = dim
        self.n_heads = n_heads
        self.n_kv_heads = n_kv_heads
        self.n_rep = n_heads // n_kv_heads
        self.head_dim = dim // n_heads
        k1, k2, k3, k4 = jax.random.split(key, 4)
        s = 0.02
        # weights stored (in, out) == torch weight (out, in) transposed
        wq = (s * jax.random.normal(k1, (dim, n_heads * self.head_dim))).astype(dtype)
        wk = (s * jax.random.normal(k2, (dim, n_kv_heads * self.head_dim))).astype(dtype)
        wv = (s * jax.random.normal(k3, (dim, n_kv_heads * self.head_dim))).astype(dtype)
        self.wo = (s * jax.random.normal(k4, (n_heads * self.head_dim, dim))).astype(dtype)
        # Fused QKV projection weight: one matmul reads x once instead of three times.
        self.wqkv = jnp.concatenate([wq, wk, wv], axis=1)
        # Causal mask is generated *inside* the attention kernel; no SxS buffer.

    def __call__(self, x, freqs_cos, freqs_sin, real):
        bsz, seqlen, ndim = x.shape
        freqs_cos = freqs_cos[:seqlen]
        freqs_sin = freqs_sin[:seqlen]
        H, KVH, hd = self.n_heads, self.n_kv_heads, self.head_dim

        # Fused Q/K/V projection (single tiled Pallas matmul).
        xf = x.reshape(bsz * seqlen, ndim)
        qkv = linear(xf, self.wqkv)                       # (B*S, (H+2*KVH)*hd)
        q_end = H * hd
        k_end = q_end + KVH * hd
        xq = qkv[:, :q_end].reshape(bsz, seqlen, H, hd)
        xk = qkv[:, q_end:k_end].reshape(bsz, seqlen, KVH, hd)
        xv = qkv[:, k_end:].reshape(bsz, seqlen, KVH, hd)

        xq, xk = apply_rotary_emb(xq, xk, freqs_cos, freqs_sin)

        # (B, S, H, hd) -> (B, H, S, hd); K/V stay un-replicated (GQA in kernel).
        q = jnp.transpose(xq, (0, 2, 1, 3))
        k = jnp.transpose(xk, (0, 2, 1, 3))
        v = jnp.transpose(xv, (0, 2, 1, 3))

        out = flash_attention(q, k, v, n_rep=self.n_rep)   # (B, H, S, hd)

        out = jnp.transpose(out, (0, 2, 1, 3)).reshape(bsz * seqlen, H * hd)
        out = linear(out, self.wo)
        return out.reshape(bsz, seqlen, self.dim)


# ------------------------------ main ------------------------------------------

if __name__ == "__main__":
    B, S, DIM = 2, 8, 32
    N_HEADS, N_KV_HEADS = 4, 2
    HEAD_DIM = DIM // N_HEADS
    MAX_SEQ_LEN = EXTEND_SEQ_LEN = S

    key = jax.random.PRNGKey(0)
    kx, kparam = jax.random.split(key)

    x = jax.random.normal(kx, (B, S, DIM), dtype=jnp.float32)

    # RoPE tables
    theta = 10000.0
    inv_freq = 1.0 / (theta ** (jnp.arange(0, HEAD_DIM, 2, dtype=jnp.float32) / HEAD_DIM))
    t = jnp.arange(EXTEND_SEQ_LEN, dtype=jnp.float32)
    angles = jnp.outer(t, inv_freq)                       # (S, hd//2)
    freqs_cos = jnp.cos(angles)
    freqs_sin = jnp.sin(angles)
    real = jnp.ones((EXTEND_SEQ_LEN,), dtype=jnp.float32)  # unused on default path

    attn = AttentionPallas(DIM, N_HEADS, N_KV_HEADS, MAX_SEQ_LEN, EXTEND_SEQ_LEN,
                           key=kparam)

    out = attn(x, freqs_cos, freqs_sin, real)
    jax.block_until_ready(out)
    assert out.shape == (B, S, DIM)
    print("KERNEL_OK")
</pallas_src>

<mosaic_0001>
module attributes {stable_mosaic.version = 11 : i64} {
  func.func @_matmul_kernel(%arg0: i32, %arg1: i32, %arg2: i32, %arg3: memref<16x32xf32, #tpu.memory_space<vmem>>, %arg4: memref<32x64xf32, #tpu.memory_space<vmem>>, %arg5: memref<16x64xf32, #tpu.memory_space<vmem>>, %arg6: memref<16x64xf32, #tpu.memory_space<vmem>>) attributes {dimension_semantics = [#tpu.dimension_semantics<parallel>, #tpu.dimension_semantics<parallel>, #tpu.dimension_semantics<arbitrary>], iteration_bounds = array<i64: 1, 1, 1>, scalar_prefetch = 0 : i64, scratch_operands = 1 : i64, tpu.core_type = #tpu.core_type<tc>, window_params = [{transform_indices = @transform_0, window_bounds = array<i64: 16, 32>}, {transform_indices = @transform_1, window_bounds = array<i64: 32, 64>}, {transform_indices = @transform_2, window_bounds = array<i64: 16, 64>}]} {
    %c0_i32 = arith.constant 0 : i32
    %0 = arith.cmpi eq, %arg2, %c0_i32 : i32
    %1 = arith.extui %0 : i1 to i32
    %c0_i32_0 = arith.constant 0 : i32
    %2 = arith.cmpi ne, %1, %c0_i32_0 : i32
    scf.if %2 {
      %cst_10 = arith.constant 0.000000e+00 : f32
      %12 = vector.broadcast %cst_10 : f32 to vector<16x64xf32>
      %c0_11 = arith.constant 0 : index
      %c0_12 = arith.constant 0 : index
      %13 = vector.load %arg6[%c0_11, %c0_12] : memref<16x64xf32, #tpu.memory_space<vmem>>, vector<16x64xf32>
      tpu.vector_store %arg6[%c0_11, %c0_12], %12 {strides = array<i32>} : memref<16x64xf32, #tpu.memory_space<vmem>>, vector<16x64xf32>,
    } else {
    }
    %c0 = arith.constant 0 : index
    %c0_1 = arith.constant 0 : index
    %3 = vector.load %arg6[%c0, %c0_1] : memref<16x64xf32, #tpu.memory_space<vmem>>, vector<16x64xf32>
    %c0_2 = arith.constant 0 : index
    %c0_3 = arith.constant 0 : index
    %4 = vector.load %arg3[%c0_2, %c0_3] : memref<16x32xf32, #tpu.memory_space<vmem>>, vector<16x32xf32>
    %c0_4 = arith.constant 0 : index
    %c0_5 = arith.constant 0 : index
    %5 = vector.load %arg4[%c0_4, %c0_5] : memref<32x64xf32, #tpu.memory_space<vmem>>, vector<32x64xf32>
    %cst = arith.constant dense<0.000000e+00> : vector<16x64xf32>
    %6 = tpu.matmul %4, %5, %cst {dimension_numbers = #tpu.dot_dimension_numbers<[1], [0], [0], [1], [0, 0, 1, 1], [], []>} : vector<16x32xf32>, vector<32x64xf32>, vector<16x64xf32> -> vector<16x64xf32>
    %7 = arith.addf %3, %6 : vector<16x64xf32>
    %c0_6 = arith.constant 0 : index
    %c0_7 = arith.constant 0 : index
    %8 = vector.load %arg6[%c0_6, %c0_7] : memref<16x64xf32, #tpu.memory_space<vmem>>, vector<16x64xf32>
    tpu.vector_store %arg6[%c0_6, %c0_7], %7 {strides = array<i32>} : memref<16x64xf32, #tpu.memory_space<vmem>>, vector<16x64xf32>,
    %c0_i32_8 = arith.constant 0 : i32
    %9 = arith.cmpi eq, %arg2, %c0_i32_8 : i32
    %10 = arith.extui %9 : i1 to i32
    %c0_i32_9 = arith.constant 0 : i32
    %11 = arith.cmpi ne, %10, %c0_i32_9 : i32
    scf.if %11 {
      %c0_10 = arith.constant 0 : index
      %c0_11 = arith.constant 0 : index
      %12 = vector.load %arg6[%c0_10, %c0_11] : memref<16x64xf32, #tpu.memory_space<vmem>>, vector<16x64xf32>
      %c0_12 = arith.constant 0 : index
      %c0_13 = arith.constant 0 : index
      %13 = vector.load %arg5[%c0_12, %c0_13] : memref<16x64xf32, #tpu.memory_space<vmem>>, vector<16x64xf32>
      tpu.vector_store %arg5[%c0_12, %c0_13], %12 {strides = array<i32>} : memref<16x64xf32, #tpu.memory_space<vmem>>, vector<16x64xf32>,
    } else {
    }
    return
  }
  func.func @transform_0(%arg0: i32, %arg1: i32, %arg2: i32) -> (i32, i32) {
    %c0_i32 = arith.constant 0 : i32
    return %arg0, %arg2 : i32, i32
  }
  func.func @transform_1(%arg0: i32, %arg1: i32, %arg2: i32) -> (i32, i32) {
    %c0_i32 = arith.constant 0 : i32
    return %arg2, %arg1 : i32, i32
  }
  func.func @transform_2(%arg0: i32, %arg1: i32, %arg2: i32) -> (i32, i32) {
    %c0_i32 = arith.constant 0 : i32
    return %arg0, %arg1 : i32, i32
  }
}

</mosaic_0001>

<llo_original>
// kernel: tpu_custom_call.1
$region0: #{tpu_custom_call.1}
  #allocation0 [shape = 'u32[]', space=smem, size = 0x4, offset = 0x4, fixed_abs, tag = 'smem constant byte address 0x4 - core index']
  #allocation1 [shape = 'u32[144,128]{1,0:T(1,128)}', space=vmem, size = 0x12000, scoped, tag = 'internal scratch']
  #allocation2 [shape = 'f32[16,64]{1,0:T(8,128)}', space=vmem, size = 0x2000, scoped, tag = 'scratch operand']
  %s0 = inlined_call_operand.hbm [shape: f32[16,32], index: 0, kind: input, shape index: {}]
  %s1 = inlined_call_operand.hbm [shape: f32[32,64], index: 1, kind: input, shape index: {}]
  %s2 = inlined_call_operand.hbm [shape: f32[16,64], index: 2, kind: output, shape index: {}]
  %s3 = sld [smem:[#allocation0]]
  $region34: #{tpu_custom_call.1} parent=0
    _
  %s5 = ssub.s32 1, %s3
  %s6 = scalar_select 0, %s5, %s3
  $region1: #{tpu_custom_call.1} parent=0
    #allocation3 [shape = 'u8[8192]{0}', space=vmem, size = 0x2000, scoped, tag = 'input window, operand 0, single buffered']
    #allocation4 [shape = 's32[1]{0}', space=sflag, size = 0x4, scoped, tag = 'scoped memory for tpu_custom_call.1']
    #allocation5 [shape = 's32[1]{0}', space=sflag, size = 0x4, scoped, tag = 'scoped memory for tpu_custom_call.1']
    #allocation6 [shape = 'u8[16384]{0}', space=vmem, size = 0x4000, scoped, tag = 'input window, operand 1, single buffered']
    #allocation7 [shape = 's32[1]{0}', space=sflag, size = 0x4, scoped, tag = 'scoped memory for tpu_custom_call.1']
    #allocation8 [shape = 'u8[8192]{0}', space=vmem, size = 0x2000, scoped, tag = 'output window, operand 0, single buffered']
    %7 = vsyncpa [#allocation4], 0
    %8 = vsyncpa [#allocation7], 0
    %9 = vsyncpa [#allocation5], 0
    // Predicated region
    $region2: #{tpu_custom_call.1} parent=1 // pred_check
      _
    $region3: #{tpu_custom_call.1} parent=1 // pred_check_branch
      %11 = sbr.rel (0) target = $region5
    $region4: #{tpu_custom_call.1} parent=1 // pred_region
      %s13 = ssub.s32 256, 256
      %14 = vsyncadd [#allocation4], %s13
      %s15 = sshll.u32 [#allocation3], 4
      %s16 = int_to_ptr.vmem [resolvable:$true] %s15
      %21 = dma.hbm_to_vmem [thread:$0]  %s0, 256, %s16, [#allocation4], 128, 128, 8
    $region5: #{tpu_custom_call.1} parent=1 // pred_fallthru
      _
    // Predicated region
    $region6: #{tpu_custom_call.1} parent=1 // pred_check
      _
    $region7: #{tpu_custom_call.1} parent=1 // pred_check_branch
      %23 = sbr.rel (0) target = $region9
    $region8: #{tpu_custom_call.1} parent=1 // pred_region
      %s25 = ssub.s32 512, 512
      %26 = vsyncadd [#allocation7], %s25
      %s27 = sshll.u32 [#allocation6], 4
      %s28 = int_to_ptr.vmem [resolvable:$true] %s27
      %33 = dma.hbm_to_vmem [thread:$0]  %s1, 512, %s28, [#allocation7], 128, 128, 8
    $region9: #{tpu_custom_call.1} parent=1 // pred_fallthru
      _
    // Predicated region
    $region10: #{tpu_custom_call.1} parent=1 // pred_check
      _
    $region11: #{tpu_custom_call.1} parent=1 // pred_check_branch
      %35 = sbr.rel (0) target = $region13
    $region12: #{tpu_custom_call.1} parent=1 // pred_region
      %36 = dma.done [#allocation4], 256
    $region13: #{tpu_custom_call.1} parent=1 // pred_fallthru
      _
    // Predicated region
    $region14: #{tpu_custom_call.1} parent=1 // pred_check
      _
    $region15: #{tpu_custom_call.1} parent=1 // pred_check_branch
      %38 = sbr.rel (0) target = $region17
    $region16: #{tpu_custom_call.1} parent=1 // pred_region
      %39 = dma.done [#allocation7], 512
    $region17: #{tpu_custom_call.1} parent=1 // pred_fallthru
      _
    %p40 = scmp.eq.s32.totalorder 0, 0
    // Predicated region
    $region18: #{tpu_custom_call.1} parent=1 // pred_check
      %p41 = pneg %p40
    $region19: #{tpu_custom_call.1} parent=1 // pred_check_branch
      %43 = sbr.rel (%p41) target = $region21
    $region20: #{tpu_custom_call.1} parent=1 // pred_region
      %vm44 = vcmask 523264
      %45 = vst.msk [vmem:[#allocation2] sm:$0xff] %vm44, 0.0
      %46 = vst.msk [vmem:[#allocation2 + $0x8] sm:$0xff] %vm44, 0.0
    $region21: #{tpu_custom_call.1} parent=1 // pred_fallthru
      _
    %v47 = vld [vmem:[#allocation2] sm:$0xff]
    %v48 = vld [vmem:[#allocation2 + $0x8] sm:$0xff]
    %v49 = vld [vmem:[#allocation3] sm:$0xff]
    %v50 = vld [vmem:[#allocation3 + $0x8] sm:$0xff]
    %v51 = vld [vmem:[#allocation6] sm:$0xff]
    %v52 = vld [vmem:[#allocation6 + $0x8] sm:$0xff]
    %v53 = vld [vmem:[#allocation6 + $0x10] sm:$0xff]
    %v54 = vld [vmem:[#allocation6 + $0x18] sm:$0xff]
    %vm55 = vcmask 261120
    %v57 = vsel %vm55, %v49, 0
    %v60 = vsel %vm55, %v50, 0
    %62 = vmatprep.subr.mxu0 0.0
    %63 = vmatpush1.msra.mxu0 %v51
    %64 = vmatprep.subr.mxu0 0.0
    %65 = vmatpush1.msra.mxu0 %v52
    %66 = vmatprep.subr.mxu0 0.0
    %67 = vmatpush1.msra.mxu0 %v53
    %68 = vmatprep.subr.mxu0 0.0
    %69 = vmatpush1.msra.mxu0 %v54
    %70 = vmatprep.subr.mxu0 0.0
    %71 = vmatpush1.msra.mxu0 0.0
    %72 = vmatprep.subr.mxu0 0.0
    %73 = vmatpush1.msra.mxu0 0.0
    %74 = vmatprep.subr.mxu0 0.0
    %75 = vmatpush1.msra.mxu0 0.0
    %76 = vmatprep.subr.mxu0 0.0
    %77 = vmatpush1.msra.mxu0 0.0
    %78 = vmatprep.subr.mxu0 0.0
    %79 = vmatpush1.msra.mxu0 0.0
    %80 = vmatprep.subr.mxu0 0.0
    %81 = vmatpush1.msra.mxu0 0.0
    %82 = vmatprep.subr.mxu0 0.0
    %83 = vmatpush1.msra.mxu0 0.0
    %84 = vmatprep.subr.mxu0 0.0
    %85 = vmatpush1.msra.mxu0 0.0
    %86 = vmatprep.subr.mxu0 0.0
    %87 = vmatpush1.msra.mxu0 0.0
    %88 = vmatprep.subr.mxu0 0.0
    %89 = vmatpush1.msra.mxu0 0.0
    %90 = vmatprep.subr.mxu0 0.0
    %91 = vmatpush1.msra.mxu0 0.0
    %92 = vmatprep.subr.mxu0 0.0
    %93 = vmatpush1.msra.mxu0 0.0
    %94 = vmatprep.subr.mxu0 0.0
    %95 = vmatpush1.msra.mxu0 0.0
    %96 = vmatprep.subr.mxu0 0.0
    %97 = vmatpush1.msra.mxu0 0.0
    %98 = vmatprep.subr.mxu0 0.0
    %99 = vmatpush1.msra.mxu0 0.0
    %100 = vmatprep.subr.mxu0 0.0
    %101 = vmatpush1.msra.mxu0 0.0
    %102 = vmatprep.subr.mxu0 0.0
    %103 = vmatpush1.msra.mxu0 0.0
    %104 = vmatprep.subr.mxu0 0.0
    %105 = vmatpush1.msra.mxu0 0.0
    %106 = vmatprep.subr.mxu0 0.0
    %107 = vmatpush1.msra.mxu0 0.0
    %108 = vmatprep.subr.mxu0 0.0
    %109 = vmatpush1.msra.mxu0 0.0
    %110 = vmatprep.subr.mxu0 0.0
    %111 = vmatpush1.msra.mxu0 0.0
    %112 = vmatprep.subr.mxu0 0.0
    %113 = vmatpush1.msra.mxu0 0.0
    %114 = vmatprep.subr.mxu0 0.0
    %115 = vmatpush1.msra.mxu0 0.0
    %116 = vmatprep.subr.mxu0 0.0
    %117 = vmatpush1.msra.mxu0 0.0
    %118 = vmatprep.subr.mxu0 0.0
    %119 = vmatpush1.msra.mxu0 0.0
    %120 = vmatprep.subr.mxu0 0.0
    %121 = vmatpush1.msra.mxu0 0.0
    %122 = vmatprep.subr.mxu0 0.0
    %123 = vmatpush1.msra.mxu0 0.0
    %124 = vmatprep.subr.mxu0 0.0
    %125 = vmatpush1.msra.mxu0 0.0
    %126 = vmatprep.mubr.f32.mxu0 0.0
    %127 = vmatmul.mubr.f32.gmra.mrb[0].mxu0 %v57
    %v128 = vpop.f32.mrb[0].mxu0
    %v129 = vadd.f32 0.0, %v128
    %v130 = vpop.f32.mrb[0].mxu0
    %131 = vmatprep.mubr.f32.mxu0 0.0
    %132 = vmatmul.mubr.f32.gmra.mrb[0].mxu0 %v60
    %v133 = vpop.f32.mrb[0].mxu0
    %v134 = vadd.f32 0.0, %v133
    %v135 = vpop.f32.mrb[0].mxu0
    %136 = vdwg.mxu0
    %v137 = vadd.f32 %v47, %v129
    %v138 = vadd.f32 %v48, %v134
    %vm139 = vcmask 523264
    %140 = vst.msk [vmem:[#allocation2] sm:$0xff] %vm139, %v137
    %141 = vst.msk [vmem:[#allocation2 + $0x8] sm:$0xff] %vm139, %v138
    // Predicated region
    $region22: #{tpu_custom_call.1} parent=1 // pred_check
      %p142 = pneg %p40
    $region23: #{tpu_custom_call.1} parent=1 // pred_check_branch
      %144 = sbr.rel (%p142) target = $region25
    $region24: #{tpu_custom_call.1} parent=1 // pred_region
      %v145 = vld [vmem:[#allocation2] sm:$0xff]
      %v146 = vld [vmem:[#allocation2 + $0x8] sm:$0xff]
      %147 = vst.msk [vmem:[#allocation8] sm:$0xff] %vm139, %v145
      %148 = vst.msk [vmem:[#allocation8 + $0x8] sm:$0xff] %vm139, %v146
    $region25: #{tpu_custom_call.1} parent=1 // pred_fallthru
      _
    // Predicated region
    $region26: #{tpu_custom_call.1} parent=1 // pred_check
      _
    $region27: #{tpu_custom_call.1} parent=1 // pred_check_branch
      %150 = sbr.rel (0) target = $region29
    $region28: #{tpu_custom_call.1} parent=1 // pred_region
      %s152 = ssub.s32 256, 256
      %153 = vsyncadd [#allocation5], %s152
      %s154 = sshll.u32 [#allocation8], 4
      %s155 = int_to_ptr.vmem [resolvable:$true] %s154
      %160 = dma.vmem_to_hbm [thread:$0]  %s155, 256, %s2, [#allocation5], 128, 128, 8
    $region29: #{tpu_custom_call.1} parent=1 // pred_fallthru
      _
    // Predicated region
    $region30: #{tpu_custom_call.1} parent=1 // pred_check
      _
    $region31: #{tpu_custom_call.1} parent=1 // pred_check_branch
      %162 = sbr.rel (0) target = $region33
    $region32: #{tpu_custom_call.1} parent=1 // pred_region
      %163 = dma.done [#allocation5], 256
    $region33: #{tpu_custom_call.1} parent=1 // pred_fallthru
      _
    %164 = vsyncpa [#allocation4], 1
    %165 = vsyncpa [#allocation7], 1
    %166 = vsyncpa [#allocation5], 1

</llo_original>
